<compile_context>
chip_gen: v7x
topology: tpu7x:2x2x1
jax: 0.10.0
libtpu: 0.0.40
codegen_flags: <defaults>
</compile_context>

<pallas_src>
import functools

import jax
import jax.numpy as jnp
import numpy as np
from jax.experimental import pallas as pl
from jax.experimental.pallas import tpu as pltpu


def _round_up(x, m):
    return ((x + m - 1) // m) * m


def _vmem_capacity_bytes():
    """Per-core VMEM capacity, with a conservative fallback."""
    try:
        info = pltpu.get_tpu_info()
        cap = int(getattr(info, "vmem_capacity_bytes", 0))
        if cap > 0:
            return cap
    except Exception:
        pass
    return 64 << 20  # v7x per-TC size; safe lower bound for v5e/v6e too


def _pick_batch_tile(B):
    """Batch (lane) tile: multiple of 128 (<=512) with >=2 grid steps when possible."""
    if B <= 128:
        tb = _round_up(max(B, 1), 8)          # single tile (block == full padded dim)
    else:
        nb = -(-B // 128)                      # ceil(B / 128)
        tb = 128 * max(1, min(4, nb // 2))     # >=2 grid steps -> both v7x cores busy
    return tb, _round_up(B, tb)


def _segmented_softmax(z, address_size):
    """z: (O, T) f32 logits (bias included). Softmax over groups of
    `address_size` consecutive rows (sublane axis); lane-dense over T."""
    o_feat, t = z.shape
    na = o_feat // address_size
    # Layout-preserving split of the sublane axis when address_size % 8 == 0.
    z3 = z.reshape(na, address_size, t)
    m = jnp.max(z3, axis=1, keepdims=True)          # sublane reduce (XLU)
    e = jnp.exp(z3 - m)                             # EUP
    s = jnp.sum(e, axis=1, keepdims=True)           # sublane reduce (XLU)
    # approx reciprocal: EUP vrcp; ~1e-3-level normalization error is acceptable
    # for softmax addressing weights (use exact division if exact norm needed).
    p = e * pl.reciprocal(s, approx=True)
    return p.reshape(o_feat, t)


def _la_kernel(x_ref, w_ref, b_ref, o_ref, *, address_size, chunk):
    """Resident-weight path.
    x_ref: (F, TB) bf16 | w_ref: (O, F) bf16 | b_ref: (O, 1) f32 | o_ref: (O, TB) f32
    """
    _, tb = o_ref.shape
    # Static 128-aligned lane chunks: bounds vreg live ranges of the epilogue
    # while keeping the MXU fed (one dot per chunk).
    for off in range(0, tb, chunk):
        z = jnp.dot(w_ref[...], x_ref[:, pl.ds(off, chunk)],
                    preferred_element_type=jnp.float32)
        z = z + b_ref[...]                       # (O,1) lane-broadcast, cheap
        p = _segmented_softmax(z, address_size)
        o_ref[:, pl.ds(off, chunk)] = p.astype(o_ref.dtype)


def _la_kernel_ktiled(x_ref, w_ref, b_ref, o_ref, *, address_size, chunk):
    """K-tiled fallback over F (weight too large for resident VMEM, e.g. v7x).
    Grid = (batch tiles [parallel], K tiles [arbitrary, last]).  The f32 output
    block itself is the accumulator (same block across the K axis)."""
    k = pl.program_id(1)

    @pl.when(k == 0)
    def _init():
        o_ref[...] = jnp.zeros_like(o_ref)

    o_ref[...] += jnp.dot(w_ref[...], x_ref[...], preferred_element_type=jnp.float32)

    @pl.when(k == pl.num_programs(1) - 1)
    def _finalize():
        _, tb = o_ref.shape
        for off in range(0, tb, chunk):
            z = o_ref[:, pl.ds(off, chunk)] + b_ref[...]
            p = _segmented_softmax(z, address_size)
            o_ref[:, pl.ds(off, chunk)] = p.astype(o_ref.dtype)


def linear_addresser(x, weight, bias, out_shape, address_size):
    """Pallas forward of LinearAddresser.

    x:      (B, F) float
    weight: (O, F)  — PyTorch nn.Linear layout (out_features, in_features)
    bias:   (O,)
    Returns softmax((x @ weight.T + bias).reshape(B, *out_shape, address_size), axis=-1).
    """
    B, F = x.shape
    O, F_w = weight.shape
    num_addresses = int(np.prod(out_shape))
    assert F_w == F
    assert O == num_addresses * address_size

    vmem_cap = _vmem_capacity_bytes()
    vmem_budget = max(int(0.85 * vmem_cap), 32 << 20)   # headroom for compiler scratch

    TB, B_pad = _pick_batch_tile(B)
    grid_b = B_pad // TB
    chunk = TB if TB <= 128 else 128                     # epilogue/matmul lane chunk

    # Streamed per-step footprint (double-buffered x tile + out tile + bias).
    stream_bytes = 2 * (F * TB * 2) + 2 * (O * TB * 4) + 2 * (O * 4)
    resident_w_bytes = 2 * (O * F * 2)                   # double-buffered bf16 weight
    single_k = (resident_w_bytes + stream_bytes) <= int(0.7 * vmem_cap)

    # bf16 MXU inputs (f32 accumulate); pad + cast + transpose is one fused pass.
    x_t = x.astype(jnp.bfloat16).T                       # (F, B)
    if B_pad != B:
        x_t = jnp.pad(x_t, ((0, 0), (0, B_pad - B)))
    w_bf16 = weight.astype(jnp.bfloat16)                 # (O, F)
    bias2d = bias.astype(jnp.float32).reshape(O, 1)

    if single_k:
        kernel = functools.partial(_la_kernel, address_size=address_size, chunk=chunk)
        grid_spec = pltpu.PrefetchScalarGridSpec(
            num_scalar_prefetch=0,
            grid=(grid_b,),
            in_specs=[
                pl.BlockSpec((F, TB), lambda i: (0, i)),   # x tile: streamed per step
                pl.BlockSpec((O, F), lambda i: (0, 0)),    # weight: fetched once, resident
                pl.BlockSpec((O, 1), lambda i: (0, 0)),    # bias:   resident
            ],
            out_specs=pl.BlockSpec((O, TB), lambda i: (0, i)),
        )
        dims = ("parallel",)
        needed = resident_w_bytes + stream_bytes
    else:
        TK = 1024
        while TK > 256 and (2 * (O * TK * 2) + 2 * (TK * TB * 2)
                            + 2 * (O * TB * 4) + 2 * (O * 4)) > int(0.7 * vmem_cap):
            TK //= 2
        F_pad = _round_up(F, TK)
        if F_pad != F:
            x_t = jnp.pad(x_t, ((0, F_pad - F), (0, 0)))
            w_bf16 = jnp.pad(w_bf16, ((0, 0), (0, F_pad - F)))
        grid_k = F_pad // TK
        kernel = functools.partial(_la_kernel_ktiled, address_size=address_size, chunk=chunk)
        grid_spec = pltpu.PrefetchScalarGridSpec(
            num_scalar_prefetch=0,
            grid=(grid_b, grid_k),                         # reduction axis last
            in_specs=[
                pl.BlockSpec((TK, TB), lambda i, k: (k, i)),
                pl.BlockSpec((O, TK), lambda i, k: (0, k)),
                pl.BlockSpec((O, 1), lambda i, k: (0, 0)),
            ],
            out_specs=pl.BlockSpec((O, TB), lambda i, k: (0, i)),
        )
        dims = ("parallel", "arbitrary")
        needed = 2 * (O * TK * 2) + 2 * (TK * TB * 2) + 2 * (O * TB * 4) + 2 * (O * 4)

    vmem_limit = int(min(max(2 * needed, 32 << 20), vmem_budget))

    cost = pl.CostEstimate(
        flops=2 * B_pad * F * O,
        transcendentals=B_pad * O,
        bytes_accessed=B_pad * F * 2 + O * F * 2 + O * 4 + B_pad * O * 4,
    )

    out = pl.pallas_call(
        kernel,
        out_shape=jax.ShapeDtypeStruct((O, B_pad), jnp.float32),
        grid_spec=grid_spec,
        compiler_params=pltpu.CompilerParams(
            dimension_semantics=dims,
            vmem_limit_bytes=vmem_limit,
        ),
        cost_estimate=cost,
    )(x_t, w_bf16, bias2d)

    if B_pad != B:
        out = out[:, :B]
    # (O, B) -> (B, O) -> (B, *out_shape, A); the transpose is one XLA pass.
    return out.T.reshape(B, *out_shape, address_size)


if __name__ == "__main__":
    # Small, module-consistent shapes.
    in_features = 32
    out_shape = (4, 4)          # num_addresses = 16
    address_size = 8            # O = 16 * 8 = 128
    batch = 2

    key = jax.random.PRNGKey(0)
    kx, kw, kb, kx2 = jax.random.split(key, 4)

    num_addresses = int(np.prod(out_shape))
    O = num_addresses * address_size

    # Deterministic "parameter" init (nn.Linear-like uniform bounds), PyTorch layout (O, F).
    bound = 1.0 / np.sqrt(in_features)
    weight = jax.random.uniform(kw, (O, in_features), jnp.float32, minval=-bound, maxval=bound)
    bias = jax.random.uniform(kb, (O,), jnp.float32, minval=-bound, maxval=bound)

    def reference(xv):
        # Mimics bf16 MXU inputs with f32 accumulation.
        xb = xv.astype(jnp.bfloat16).astype(jnp.float32)
        wb = weight.astype(jnp.bfloat16).astype(jnp.float32)
        r = (xb @ wb.T + bias).reshape(xv.shape[0], *out_shape, address_size)
        return jax.nn.softmax(r, axis=-1)

    # 1) Tiny batch: single-tile path.
    x = jax.random.normal(kx, (batch, in_features), jnp.float32)
    y = jax.block_until_ready(linear_addresser(x, weight, bias, out_shape, address_size))
    np.testing.assert_allclose(np.asarray(y), np.asarray(reference(x)), rtol=5e-2, atol=5e-3)
    assert y.shape == (batch, *out_shape, address_size)

    # 2) Larger batch: exercises multi-step grid, 128-lane chunked epilogue and
    #    ragged-batch padding.
    b2 = 640
    x2 = jax.random.normal(kx2, (b2, in_features), jnp.float32)
    y2 = jax.block_until_ready(linear_addresser(x2, weight, bias, out_shape, address_size))
    np.testing.assert_allclose(np.asarray(y2), np.asarray(reference(x2)), rtol=5e-2, atol=5e-3)
    assert y2.shape == (b2, *out_shape, address_size)

    print("KERNEL_OK")
</pallas_src>

<mosaic_0001>
module attributes {stable_mosaic.version = 11 : i64} {
  func.func @_la_kernel(%arg0: i32, %arg1: memref<32x8xbf16, #tpu.memory_space<vmem>>, %arg2: memref<128x32xbf16, #tpu.memory_space<vmem>>, %arg3: memref<128x1xf32, #tpu.memory_space<vmem>>, %arg4: memref<128x8xf32, #tpu.memory_space<vmem>>) attributes {dimension_semantics = [#tpu.dimension_semantics<parallel>], iteration_bounds = array<i64: 1>, scalar_prefetch = 0 : i64, scratch_operands = 0 : i64, tpu.core_type = #tpu.core_type<tc>, window_params = [{transform_indices = @transform_0, window_bounds = array<i64: 32, 8>}, {pipeline_mode = #tpu.pipeline_mode<synchronous>, transform_indices = @transform_1, window_bounds = array<i64: 128, 32>}, {pipeline_mode = #tpu.pipeline_mode<synchronous>, transform_indices = @transform_2, window_bounds = array<i64: 128, 1>}, {transform_indices = @transform_3, window_bounds = array<i64: 128, 8>}]} {
    %c0 = arith.constant 0 : index
    %c0_0 = arith.constant 0 : index
    %0 = vector.load %arg2[%c0, %c0_0] : memref<128x32xbf16, #tpu.memory_space<vmem>>, vector<128x32xbf16>
    %c0_1 = arith.constant 0 : index
    %c0_2 = arith.constant 0 : index
    %1 = vector.load %arg1[%c0_1, %c0_2] : memref<32x8xbf16, #tpu.memory_space<vmem>>, vector<32x8xbf16>
    %cst = arith.constant dense<0.000000e+00> : vector<128x8xf32>
    %2 = tpu.matmul %0, %1, %cst {dimension_numbers = #tpu.dot_dimension_numbers<[1], [0], [0], [1], [0, 0, 1, 1], [], []>} : vector<128x32xbf16>, vector<32x8xbf16>, vector<128x8xf32> -> vector<128x8xf32>
    %c0_3 = arith.constant 0 : index
    %c0_4 = arith.constant 0 : index
    %3 = vector.load %arg3[%c0_3, %c0_4] : memref<128x1xf32, #tpu.memory_space<vmem>>, vector<128x1xf32>
    %4 = vector.broadcast %3 : vector<128x1xf32> to vector<128x8xf32>
    %5 = arith.addf %2, %4 : vector<128x8xf32>
    %6 = vector.shape_cast %5 : vector<128x8xf32> to vector<16x8x8xf32>
    %cst_5 = arith.constant dense<0xFF800000> : vector<16x8xf32>
    %7 = vector.multi_reduction <maximumf>, %6, %cst_5 [1] : vector<16x8x8xf32> to vector<16x8xf32>
    %8 = vector.shape_cast %7 : vector<16x8xf32> to vector<16x1x8xf32>
    %9 = vector.broadcast %8 : vector<16x1x8xf32> to vector<16x8x8xf32>
    %10 = arith.subf %6, %9 : vector<16x8x8xf32>
    %11 = math.exp %10 : vector<16x8x8xf32>
    %cst_6 = arith.constant dense<0.000000e+00> : vector<16x8xf32>
    %12 = vector.multi_reduction <add>, %11, %cst_6 [1] : vector<16x8x8xf32> to vector<16x8xf32>
    %13 = vector.shape_cast %12 : vector<16x8xf32> to vector<16x1x8xf32>
    %14 = tpu.reciprocal %13 {approx = true} : vector<16x1x8xf32> -> vector<16x1x8xf32>
    %15 = vector.broadcast %14 : vector<16x1x8xf32> to vector<16x8x8xf32>
    %16 = arith.mulf %11, %15 : vector<16x8x8xf32>
    %17 = vector.shape_cast %16 : vector<16x8x8xf32> to vector<128x8xf32>
    %c0_7 = arith.constant 0 : index
    %c0_8 = arith.constant 0 : index
    %18 = vector.load %arg4[%c0_7, %c0_8] : memref<128x8xf32, #tpu.memory_space<vmem>>, vector<128x8xf32>
    tpu.vector_store %arg4[%c0_7, %c0_8], %17 {strides = array<i32>} : memref<128x8xf32, #tpu.memory_space<vmem>>, vector<128x8xf32>,
    return
  }
  func.func @transform_0(%arg0: i32) -> (i32, i32) {
    %c0_i32 = arith.constant 0 : i32
    %c0_i32_0 = arith.constant 0 : i32
    return %c0_i32, %arg0 : i32, i32
  }
  func.func @transform_1(%arg0: i32) -> (i32, i32) {
    %c0_i32 = arith.constant 0 : i32
    %c0_i32_0 = arith.constant 0 : i32
    %c0_i32_1 = arith.constant 0 : i32
    return %c0_i32, %c0_i32_0 : i32, i32
  }
  func.func @transform_2(%arg0: i32) -> (i32, i32) {
    %c0_i32 = arith.constant 0 : i32
    %c0_i32_0 = arith.constant 0 : i32
    %c0_i32_1 = arith.constant 0 : i32
    return %c0_i32, %c0_i32_0 : i32, i32
  }
  func.func @transform_3(%arg0: i32) -> (i32, i32) {
    %c0_i32 = arith.constant 0 : i32
    %c0_i32_0 = arith.constant 0 : i32
    return %c0_i32, %arg0 : i32, i32
  }
}

</mosaic_0001>

<llo_original>
// kernel: tpu_custom_call.1
$region0: #{tpu_custom_call.1}
  #allocation0 [shape = 'u32[]', space=smem, size = 0x4, offset = 0x4, fixed_abs, tag = 'smem constant byte address 0x4 - core index']
  #allocation1 [shape = 'u32[144,128]{1,0:T(1,128)}', space=vmem, size = 0x12000, scoped, tag = 'internal scratch']
  %s0 = inlined_call_operand.vmem [shape: bf16[32,8], index: 0, kind: input, shape index: {}]
  %s1 = inlined_call_operand.vmem [shape: bf16[128,32], index: 1, kind: input, shape index: {}]
  %s2 = inlined_call_operand.vmem [shape: f32[128,1], index: 2, kind: input, shape index: {}]
  %s3 = inlined_call_operand.vmem [shape: f32[128,8], index: 3, kind: output, shape index: {}]
  %s4 = sld [smem:[#allocation0]]
  $region22: #{tpu_custom_call.1} parent=0
    _
  %s6 = ssub.s32 1, %s4
  %s7 = scalar_select 0, %s6, %s4
  // Predicated region
  $region2: #{tpu_custom_call.1} parent=0 // pred_check
    _
  $region3: #{tpu_custom_call.1} parent=0 // pred_check_branch
    %9 = sbr.rel (0) target = $region5
  $region4: #{tpu_custom_call.1} parent=0 // pred_region
    _
  $region5: #{tpu_custom_call.1} parent=0 // pred_fallthru
    _
  // Predicated region
  $region6: #{tpu_custom_call.1} parent=0 // pred_check
    _
  $region7: #{tpu_custom_call.1} parent=0 // pred_check_branch
    %11 = sbr.rel (0) target = $region9
  $region8: #{tpu_custom_call.1} parent=0 // pred_region
    _
  $region9: #{tpu_custom_call.1} parent=0 // pred_fallthru
    _
  // Predicated region
  $region10: #{tpu_custom_call.1} parent=0 // pred_check
    _
  $region11: #{tpu_custom_call.1} parent=0 // pred_check_branch
    %13 = sbr.rel (0) target = $region13
  $region12: #{tpu_custom_call.1} parent=0 // pred_region
    _
  $region13: #{tpu_custom_call.1} parent=0 // pred_fallthru
    _
  %v15 = vld [vmem:[%s1] sm:$0xf]
  %v16 = vld [vmem:[%s1 + $0x4] sm:$0xf]
  %v17 = vld [vmem:[%s1 + $0x8] sm:$0xf]
  %v18 = vld [vmem:[%s1 + $0xc] sm:$0xf]
  %v19 = vld [vmem:[%s1 + $0x10] sm:$0xf]
  %v20 = vld [vmem:[%s1 + $0x14] sm:$0xf]
  %v21 = vld [vmem:[%s1 + $0x18] sm:$0xf]
  %v22 = vld [vmem:[%s1 + $0x1c] sm:$0xf]
  %v23 = vld [vmem:[%s1 + $0x20] sm:$0xf]
  %v24 = vld [vmem:[%s1 + $0x24] sm:$0xf]
  %v25 = vld [vmem:[%s1 + $0x28] sm:$0xf]
  %v26 = vld [vmem:[%s1 + $0x2c] sm:$0xf]
  %v27 = vld [vmem:[%s1 + $0x30] sm:$0xf]
  %v28 = vld [vmem:[%s1 + $0x34] sm:$0xf]
  %v29 = vld [vmem:[%s1 + $0x38] sm:$0xf]
  %v30 = vld [vmem:[%s1 + $0x3c] sm:$0xf]
  %v31 = vld [vmem:[%s0] sm:$0xf]
  %v32 = vld [vmem:[%s0 + $0x4] sm:$0xf]
  %v33 = vld [vmem:[%s0 + $0x8] sm:$0xf]
  %v34 = vld [vmem:[%s0 + $0xc] sm:$0xf]
  %v35 = vld [vmem:[%s2] sm:$0xff]
  %v36 = vld [vmem:[%s2 + $0x8] sm:$0xff]
  %v37 = vld [vmem:[%s2 + $0x10] sm:$0xff]
  %v38 = vld [vmem:[%s2 + $0x18] sm:$0xff]
  %v39 = vld [vmem:[%s2 + $0x20] sm:$0xff]
  %v40 = vld [vmem:[%s2 + $0x28] sm:$0xff]
  %v41 = vld [vmem:[%s2 + $0x30] sm:$0xff]
  %v42 = vld [vmem:[%s2 + $0x38] sm:$0xff]
  %v43 = vld [vmem:[%s2 + $0x40] sm:$0xff]
  %v44 = vld [vmem:[%s2 + $0x48] sm:$0xff]
  %v45 = vld [vmem:[%s2 + $0x50] sm:$0xff]
  %v46 = vld [vmem:[%s2 + $0x58] sm:$0xff]
  %v47 = vld [vmem:[%s2 + $0x60] sm:$0xff]
  %v48 = vld [vmem:[%s2 + $0x68] sm:$0xff]
  %v49 = vld [vmem:[%s2 + $0x70] sm:$0xff]
  %v50 = vld [vmem:[%s2 + $0x78] sm:$0xff]
  %52 = vset.pattern.permute.xlu0 0
  %53 = vperm.xlu0 %52, %v35
  %v54 = vpop.permute.xlu0 %53
  %57 = vset.pattern.permute.xlu0 0
  %58 = vperm.xlu0 %57, %v36
  %v59 = vpop.permute.xlu0 %58
  %62 = vset.pattern.permute.xlu0 0
  %63 = vperm.xlu0 %62, %v37
  %v64 = vpop.permute.xlu0 %63
  %67 = vset.pattern.permute.xlu0 0
  %68 = vperm.xlu0 %67, %v38
  %v69 = vpop.permute.xlu0 %68
  %72 = vset.pattern.permute.xlu0 0
  %73 = vperm.xlu0 %72, %v39
  %v74 = vpop.permute.xlu0 %73
  %77 = vset.pattern.permute.xlu0 0
  %78 = vperm.xlu0 %77, %v40
  %v79 = vpop.permute.xlu0 %78
  %82 = vset.pattern.permute.xlu0 0
  %83 = vperm.xlu0 %82, %v41
  %v84 = vpop.permute.xlu0 %83
  %87 = vset.pattern.permute.xlu0 0
  %88 = vperm.xlu0 %87, %v42
  %v89 = vpop.permute.xlu0 %88
  %92 = vset.pattern.permute.xlu0 0
  %93 = vperm.xlu0 %92, %v43
  %v94 = vpop.permute.xlu0 %93
  %97 = vset.pattern.permute.xlu0 0
  %98 = vperm.xlu0 %97, %v44
  %v99 = vpop.permute.xlu0 %98
  %102 = vset.pattern.permute.xlu0 0
  %103 = vperm.xlu0 %102, %v45
  %v104 = vpop.permute.xlu0 %103
  %107 = vset.pattern.permute.xlu0 0
  %108 = vperm.xlu0 %107, %v46
  %v109 = vpop.permute.xlu0 %108
  %112 = vset.pattern.permute.xlu0 0
  %113 = vperm.xlu0 %112, %v47
  %v114 = vpop.permute.xlu0 %113
  %117 = vset.pattern.permute.xlu0 0
  %118 = vperm.xlu0 %117, %v48
  %v119 = vpop.permute.xlu0 %118
  %122 = vset.pattern.permute.xlu0 0
  %123 = vperm.xlu0 %122, %v49
  %v124 = vpop.permute.xlu0 %123
  %127 = vset.pattern.permute.xlu0 0
  %128 = vperm.xlu0 %127, %v50
  %v129 = vpop.permute.xlu0 %128
  %v147 = vunpack.c.l.b16 %v15
  %v148 = vunpack.c.l.b16 %v16
  %v149 = vunpack.c.l.b16 %v17
  %v150 = vunpack.c.l.b16 %v18
  %v151 = vunpack.c.l.b16 %v19
  %v152 = vunpack.c.l.b16 %v20
  %v153 = vunpack.c.l.b16 %v21
  %v154 = vunpack.c.l.b16 %v22
  %v155 = vunpack.c.l.b16 %v23
  %v156 = vunpack.c.l.b16 %v24
  %v157 = vunpack.c.l.b16 %v25
  %v158 = vunpack.c.l.b16 %v26
  %v159 = vunpack.c.l.b16 %v27
  %v160 = vunpack.c.l.b16 %v28
  %v161 = vunpack.c.l.b16 %v29
  %v162 = vunpack.c.l.b16 %v30
  %v163 = vpack.c.b16 %v148, %v147
  %v164 = vpack.c.b16 %v150, %v149
  %v165 = vpack.c.b16 %v152, %v151
  %v166 = vpack.c.b16 %v154, %v153
  %v167 = vpack.c.b16 %v156, %v155
  %v168 = vpack.c.b16 %v158, %v157
  %v169 = vpack.c.b16 %v160, %v159
  %v170 = vpack.c.b16 %v162, %v161
  %v175 = vunpack.c.l.b16 %v31
  %v176 = vunpack.c.l.b16 %v32
  %v177 = vunpack.c.l.b16 %v33
  %v178 = vunpack.c.l.b16 %v34
  %v179 = vpack.c.b16 %v176, %v175
  %v180 = vpack.c.b16 %v178, %v177
  %vm183 = vcmask 261120
  %v185 = vsel %vm183, %v163, 0
  %v188 = vsel %vm183, %v164, 0
  %v191 = vsel %vm183, %v165, 0
  %v194 = vsel %vm183, %v166, 0
  %v197 = vsel %vm183, %v167, 0
  %v200 = vsel %vm183, %v168, 0
  %v203 = vsel %vm183, %v169, 0
  %v206 = vsel %vm183, %v170, 0
  %208 = vmatprep.subr.bf16.mxu0 0
  %209 = vmatpush1.bf16.msra.mxu0 %v179
  %210 = vmatprep.subr.bf16.mxu0 0
  %211 = vmatpush1.bf16.msra.mxu0 %v180
  %212 = vmatprep.subr.bf16.mxu0 0
  %213 = vmatpush1.bf16.msra.mxu0 0
  %214 = vmatprep.subr.bf16.mxu0 0
  %215 = vmatpush1.bf16.msra.mxu0 0
  %216 = vmatprep.subr.bf16.mxu0 0
  %217 = vmatpush1.bf16.msra.mxu0 0
  %218 = vmatprep.subr.bf16.mxu0 0
  %219 = vmatpush1.bf16.msra.mxu0 0
  %220 = vmatprep.subr.bf16.mxu0 0
  %221 = vmatpush1.bf16.msra.mxu0 0
  %222 = vmatprep.subr.bf16.mxu0 0
  %223 = vmatpush1.bf16.msra.mxu0 0
  %224 = vmatprep.subr.bf16.mxu0 0
  %225 = vmatpush1.bf16.msra.mxu0 0
  %226 = vmatprep.subr.bf16.mxu0 0
  %227 = vmatpush1.bf16.msra.mxu0 0
  %228 = vmatprep.subr.bf16.mxu0 0
  %229 = vmatpush1.bf16.msra.mxu0 0
  %230 = vmatprep.subr.bf16.mxu0 0
  %231 = vmatpush1.bf16.msra.mxu0 0
  %232 = vmatprep.subr.bf16.mxu0 0
  %233 = vmatpush1.bf16.msra.mxu0 0
  %234 = vmatprep.subr.bf16.mxu0 0
  %235 = vmatpush1.bf16.msra.mxu0 0
  %236 = vmatprep.subr.bf16.mxu0 0
  %237 = vmatpush1.bf16.msra.mxu0 0
  %238 = vmatprep.subr.bf16.mxu0 0
  %239 = vmatpush1.bf16.msra.mxu0 0
  %240 = vmatprep.mubr.bf16.mxu0 0
  %241 = vmatmul.mubr.bf16.gmra.mrb[0].mxu0 %v185
  %v242 = vpop.f32.mrb[0].mxu0
  %v243 = vadd.f32 %v54, %v242
  %v244 = vpop.f32.mrb[0].mxu0
  %v245 = vpop.f32.mrb[0].mxu0
  %v246 = vadd.f32 %v59, %v245
  %v247 = vpop.f32.mrb[0].mxu0
  %248 = vmatprep.mubr.bf16.mxu0 0
  %249 = vmatmul.mubr.bf16.gmra.mrb[0].mxu0 %v188
  %v250 = vpop.f32.mrb[0].mxu0
  %v251 = vadd.f32 %v64, %v250
  %v252 = vpop.f32.mrb[0].mxu0
  %v253 = vpop.f32.mrb[0].mxu0
  %v254 = vadd.f32 %v69, %v253
  %v255 = vpop.f32.mrb[0].mxu0
  %256 = vmatprep.mubr.bf16.mxu0 0
  %257 = vmatmul.mubr.bf16.gmra.mrb[0].mxu0 %v191
  %v258 = vpop.f32.mrb[0].mxu0
  %v259 = vadd.f32 %v74, %v258
  %v260 = vpop.f32.mrb[0].mxu0
  %v261 = vpop.f32.mrb[0].mxu0
  %v262 = vadd.f32 %v79, %v261
  %v263 = vpop.f32.mrb[0].mxu0
  %264 = vmatprep.mubr.bf16.mxu0 0
  %265 = vmatmul.mubr.bf16.gmra.mrb[0].mxu0 %v194
  %v266 = vpop.f32.mrb[0].mxu0
  %v267 = vadd.f32 %v84, %v266
  %v268 = vpop.f32.mrb[0].mxu0
  %v269 = vpop.f32.mrb[0].mxu0
  %v270 = vadd.f32 %v89, %v269
  %v271 = vpop.f32.mrb[0].mxu0
  %272 = vmatprep.mubr.bf16.mxu0 0
  %273 = vmatmul.mubr.bf16.gmra.mrb[0].mxu0 %v197
  %v274 = vpop.f32.mrb[0].mxu0
  %v275 = vadd.f32 %v94, %v274
  %v276 = vpop.f32.mrb[0].mxu0
  %v277 = vpop.f32.mrb[0].mxu0
  %v278 = vadd.f32 %v99, %v277
  %v279 = vpop.f32.mrb[0].mxu0
  %280 = vmatprep.mubr.bf16.mxu0 0
  %281 = vmatmul.mubr.bf16.gmra.mrb[0].mxu0 %v200
  %v282 = vpop.f32.mrb[0].mxu0
  %v283 = vadd.f32 %v104, %v282
  %v284 = vpop.f32.mrb[0].mxu0
  %v285 = vpop.f32.mrb[0].mxu0
  %v286 = vadd.f32 %v109, %v285
  %v287 = vpop.f32.mrb[0].mxu0
  %288 = vmatprep.mubr.bf16.mxu0 0
  %289 = vmatmul.mubr.bf16.gmra.mrb[0].mxu0 %v203
  %v290 = vpop.f32.mrb[0].mxu0
  %v291 = vadd.f32 %v114, %v290
  %v292 = vpop.f32.mrb[0].mxu0
  %v293 = vpop.f32.mrb[0].mxu0
  %v294 = vadd.f32 %v119, %v293
  %v295 = vpop.f32.mrb[0].mxu0
  %296 = vmatprep.mubr.bf16.mxu0 0
  %297 = vmatmul.mubr.bf16.gmra.mrb[0].mxu0 %v206
  %v298 = vpop.f32.mrb[0].mxu0
  %v299 = vadd.f32 %v124, %v298
  %v300 = vpop.f32.mrb[0].mxu0
  %v301 = vpop.f32.mrb[0].mxu0
  %v302 = vadd.f32 %v129, %v301
  %v303 = vpop.f32.mrb[0].mxu0
  %304 = vdwg.mxu0
  %vm305 = vcmask 64512
  %v306 = vsel %vm305, %v243, -inf
  %v307 = vrot.slane %v306, 4
  %v308 = vmax.f32 %v306, %v307
  %v309 = vrot.slane %v308, 2
  %v310 = vmax.f32 %v308, %v309
  %v311 = vrot.slane %v310, 1
  %v312 = vmax.f32 %v310, %v311
  %v313 = vsel %vm305, %v246, -inf
  %v314 = vrot.slane %v313, 4
  %v315 = vmax.f32 %v313, %v314
  %v316 = vrot.slane %v315, 2
  %v317 = vmax.f32 %v315, %v316
  %v318 = vrot.slane %v317, 1
  %v319 = vmax.f32 %v317, %v318
  %v320 = vsel %vm305, %v251, -inf
  %v321 = vrot.slane %v320, 4
  %v322 = vmax.f32 %v320, %v321
  %v323 = vrot.slane %v322, 2
  %v324 = vmax.f32 %v322, %v323
  %v325 = vrot.slane %v324, 1
  %v326 = vmax.f32 %v324, %v325
  %v327 = vsel %vm305, %v254, -inf
  %v328 = vrot.slane %v327, 4
  %v329 = vmax.f32 %v327, %v328
  %v330 = vrot.slane %v329, 2
  %v331 = vmax.f32 %v329, %v330
  %v332 = vrot.slane %v331, 1
  %v333 = vmax.f32 %v331, %v332
  %v334 = vsel %vm305, %v259, -inf
  %v335 = vrot.slane %v334, 4
  %v336 = vmax.f32 %v334, %v335
  %v337 = vrot.slane %v336, 2
  %v338 = vmax.f32 %v336, %v337
  %v339 = vrot.slane %v338, 1
  %v340 = vmax.f32 %v338, %v339
  %v341 = vsel %vm305, %v262, -inf
  %v342 = vrot.slane %v341, 4
  %v343 = vmax.f32 %v341, %v342
  %v344 = vrot.slane %v343, 2
  %v345 = vmax.f32 %v343, %v344
  %v346 = vrot.slane %v345, 1
  %v347 = vmax.f32 %v345, %v346
  %v348 = vsel %vm305, %v267, -inf
  %v349 = vrot.slane %v348, 4
  %v350 = vmax.f32 %v348, %v349
  %v351 = vrot.slane %v350, 2
  %v352 = vmax.f32 %v350, %v351
  %v353 = vrot.slane %v352, 1
  %v354 = vmax.f32 %v352, %v353
  %v355 = vsel %vm305, %v270, -inf
  %v356 = vrot.slane %v355, 4
  %v357 = vmax.f32 %v355, %v356
  %v358 = vrot.slane %v357, 2
  %v359 = vmax.f32 %v357, %v358
  %v360 = vrot.slane %v359, 1
  %v361 = vmax.f32 %v359, %v360
  %v362 = vsel %vm305, %v275, -inf
  %v363 = vrot.slane %v362, 4
  %v364 = vmax.f32 %v362, %v363
  %v365 = vrot.slane %v364, 2
  %v366 = vmax.f32 %v364, %v365
  %v367 = vrot.slane %v366, 1
  %v368 = vmax.f32 %v366, %v367
  %v369 = vsel %vm305, %v278, -inf
  %v370 = vrot.slane %v369, 4
  %v371 = vmax.f32 %v369, %v370
  %v372 = vrot.slane %v371, 2
  %v373 = vmax.f32 %v371, %v372
  %v374 = vrot.slane %v373, 1
  %v375 = vmax.f32 %v373, %v374
  %v376 = vsel %vm305, %v283, -inf
  %v377 = vrot.slane %v376, 4
  %v378 = vmax.f32 %v376, %v377
  %v379 = vrot.slane %v378, 2
  %v380 = vmax.f32 %v378, %v379
  %v381 = vrot.slane %v380, 1
  %v382 = vmax.f32 %v380, %v381
  %v383 = vsel %vm305, %v286, -inf
  %v384 = vrot.slane %v383, 4
  %v385 = vmax.f32 %v383, %v384
  %v386 = vrot.slane %v385, 2
  %v387 = vmax.f32 %v385, %v386
  %v388 = vrot.slane %v387, 1
  %v389 = vmax.f32 %v387, %v388
  %v390 = vsel %vm305, %v291, -inf
  %v391 = vrot.slane %v390, 4
  %v392 = vmax.f32 %v390, %v391
  %v393 = vrot.slane %v392, 2
  %v394 = vmax.f32 %v392, %v393
  %v395 = vrot.slane %v394, 1
  %v396 = vmax.f32 %v394, %v395
  %v397 = vsel %vm305, %v294, -inf
  %v398 = vrot.slane %v397, 4
  %v399 = vmax.f32 %v397, %v398
  %v400 = vrot.slane %v399, 2
  %v401 = vmax.f32 %v399, %v400
  %v402 = vrot.slane %v401, 1
  %v403 = vmax.f32 %v401, %v402
  %v404 = vsel %vm305, %v299, -inf
  %v405 = vrot.slane %v404, 4
  %v406 = vmax.f32 %v404, %v405
  %v407 = vrot.slane %v406, 2
  %v408 = vmax.f32 %v406, %v407
  %v409 = vrot.slane %v408, 1
  %v410 = vmax.f32 %v408, %v409
  %v411 = vsel %vm305, %v302, -inf
  %v412 = vrot.slane %v411, 4
  %v413 = vmax.f32 %v411, %v412
  %v414 = vrot.slane %v413, 2
  %v415 = vmax.f32 %v413, %v414
  %v416 = vrot.slane %v415, 1
  %v417 = vmax.f32 %v415, %v416
  %v418 = vsub.f32 %v243, %v312
  %v419 = vsub.f32 %v246, %v319
  %v420 = vsub.f32 %v251, %v326
  %v421 = vsub.f32 %v254, %v333
  %v422 = vsub.f32 %v259, %v340
  %v423 = vsub.f32 %v262, %v347
  %v424 = vsub.f32 %v267, %v354
  %v425 = vsub.f32 %v270, %v361
  %v426 = vsub.f32 %v275, %v368
  %v427 = vsub.f32 %v278, %v375
  %v428 = vsub.f32 %v283, %v382
  %v429 = vsub.f32 %v286, %v389
  %v430 = vsub.f32 %v291, %v396
  %v431 = vsub.f32 %v294, %v403
  %v432 = vsub.f32 %v299, %v410
  %v433 = vsub.f32 %v302, %v417
  %v434 = vmul.f32 %v418, 1.442695
  %v435 = vpow.pop %v434
  %v436 = vmul.f32 %v419, 1.442695
  %v437 = vpow.pop %v436
  %v438 = vmul.f32 %v420, 1.442695
  %v439 = vpow.pop %v438
  %v440 = vmul.f32 %v421, 1.442695
  %v441 = vpow.pop %v440
  %v442 = vmul.f32 %v422, 1.442695
  %v443 = vpow.pop %v442
  %v444 = vmul.f32 %v423, 1.442695
  %v445 = vpow.pop %v444
  %v446 = vmul.f32 %v424, 1.442695
  %v447 = vpow.pop %v446
  %v448 = vmul.f32 %v425, 1.442695
  %v449 = vpow.pop %v448
  %v450 = vmul.f32 %v426, 1.442695
  %v451 = vpow.pop %v450
  %v452 = vmul.f32 %v427, 1.442695
  %v453 = vpow.pop %v452
  %v454 = vmul.f32 %v428, 1.442695
  %v455 = vpow.pop %v454
  %v456 = vmul.f32 %v429, 1.442695
  %v457 = vpow.pop %v456
  %v458 = vmul.f32 %v430, 1.442695
  %v459 = vpow.pop %v458
  %v460 = vmul.f32 %v431, 1.442695
  %v461 = vpow.pop %v460
  %v462 = vmul.f32 %v432, 1.442695
  %v463 = vpow.pop %v462
  %v464 = vmul.f32 %v433, 1.442695
  %v465 = vpow.pop %v464
  %v466 = vsel %vm305, %v435, 0.0
  %v467 = vrot.slane %v466, 4
  %v468 = vadd.f32 %v466, %v467
  %v469 = vrot.slane %v468, 2
  %v470 = vadd.f32 %v468, %v469
  %v471 = vrot.slane %v470, 1
  %v472 = vadd.f32 %v470, %v471
  %v473 = vsel %vm305, %v437, 0.0
  %v474 = vrot.slane %v473, 4
  %v475 = vadd.f32 %v473, %v474
  %v476 = vrot.slane %v475, 2
  %v477 = vadd.f32 %v475, %v476
  %v478 = vrot.slane %v477, 1
  %v479 = vadd.f32 %v477, %v478
  %v480 = vsel %vm305, %v439, 0.0
  %v481 = vrot.slane %v480, 4
  %v482 = vadd.f32 %v480, %v481
  %v483 = vrot.slane %v482, 2
  %v484 = vadd.f32 %v482, %v483
  %v485 = vrot.slane %v484, 1
  %v486 = vadd.f32 %v484, %v485
  %v487 = vsel %vm305, %v441, 0.0
  %v488 = vrot.slane %v487, 4
  %v489 = vadd.f32 %v487, %v488
  %v490 = vrot.slane %v489, 2
  %v491 = vadd.f32 %v489, %v490
  %v492 = vrot.slane %v491, 1
  %v493 = vadd.f32 %v491, %v492
  %v494 = vsel %vm305, %v443, 0.0
  %v495 = vrot.slane %v494, 4
  %v496 = vadd.f32 %v494, %v495
  %v497 = vrot.slane %v496, 2
  %v498 = vadd.f32 %v496, %v497
  %v499 = vrot.slane %v498, 1
  %v500 = vadd.f32 %v498, %v499
  %v501 = vsel %vm305, %v445, 0.0
  %v502 = vrot.slane %v501, 4
  %v503 = vadd.f32 %v501, %v502
  %v504 = vrot.slane %v503, 2
  %v505 = vadd.f32 %v503, %v504
  %v506 = vrot.slane %v505, 1
  %v507 = vadd.f32 %v505, %v506
  %v508 = vsel %vm305, %v447, 0.0
  %v509 = vrot.slane %v508, 4
  %v510 = vadd.f32 %v508, %v509
  %v511 = vrot.slane %v510, 2
  %v512 = vadd.f32 %v510, %v511
  %v513 = vrot.slane %v512, 1
  %v514 = vadd.f32 %v512, %v513
  %v515 = vsel %vm305, %v449, 0.0
  %v516 = vrot.slane %v515, 4
  %v517 = vadd.f32 %v515, %v516
  %v518 = vrot.slane %v517, 2
  %v519 = vadd.f32 %v517, %v518
  %v520 = vrot.slane %v519, 1
  %v521 = vadd.f32 %v519, %v520
  %v522 = vsel %vm305, %v451, 0.0
  %v523 = vrot.slane %v522, 4
  %v524 = vadd.f32 %v522, %v523
  %v525 = vrot.slane %v524, 2
  %v526 = vadd.f32 %v524, %v525
  %v527 = vrot.slane %v526, 1
  %v528 = vadd.f32 %v526, %v527
  %v529 = vsel %vm305, %v453, 0.0
  %v530 = vrot.slane %v529, 4
  %v531 = vadd.f32 %v529, %v530
  %v532 = vrot.slane %v531, 2
  %v533 = vadd.f32 %v531, %v532
  %v534 = vrot.slane %v533, 1
  %v535 = vadd.f32 %v533, %v534
  %v536 = vsel %vm305, %v455, 0.0
  %v537 = vrot.slane %v536, 4
  %v538 = vadd.f32 %v536, %v537
  %v539 = vrot.slane %v538, 2
  %v540 = vadd.f32 %v538, %v539
  %v541 = vrot.slane %v540, 1
  %v542 = vadd.f32 %v540, %v541
  %v543 = vsel %vm305, %v457, 0.0
  %v544 = vrot.slane %v543, 4
  %v545 = vadd.f32 %v543, %v544
  %v546 = vrot.slane %v545, 2
  %v547 = vadd.f32 %v545, %v546
  %v548 = vrot.slane %v547, 1
  %v549 = vadd.f32 %v547, %v548
  %v550 = vsel %vm305, %v459, 0.0
  %v551 = vrot.slane %v550, 4
  %v552 = vadd.f32 %v550, %v551
  %v553 = vrot.slane %v552, 2
  %v554 = vadd.f32 %v552, %v553
  %v555 = vrot.slane %v554, 1
  %v556 = vadd.f32 %v554, %v555
  %v557 = vsel %vm305, %v461, 0.0
  %v558 = vrot.slane %v557, 4
  %v559 = vadd.f32 %v557, %v558
  %v560 = vrot.slane %v559, 2
  %v561 = vadd.f32 %v559, %v560
  %v562 = vrot.slane %v561, 1
  %v563 = vadd.f32 %v561, %v562
  %v564 = vsel %vm305, %v463, 0.0
  %v565 = vrot.slane %v564, 4
  %v566 = vadd.f32 %v564, %v565
  %v567 = vrot.slane %v566, 2
  %v568 = vadd.f32 %v566, %v567
  %v569 = vrot.slane %v568, 1
  %v570 = vadd.f32 %v568, %v569
  %v571 = vsel %vm305, %v465, 0.0
  %v572 = vrot.slane %v571, 4
  %v573 = vadd.f32 %v571, %v572
  %v574 = vrot.slane %v573, 2
  %v575 = vadd.f32 %v573, %v574
  %v576 = vrot.slane %v575, 1
  %v577 = vadd.f32 %v575, %v576
  %v578 = vrcp.pop %v472
  %v579 = vrcp.pop %v479
  %v580 = vrcp.pop %v486
  %v581 = vrcp.pop %v493
  %v582 = vrcp.pop %v500
  %v583 = vrcp.pop %v507
  %v584 = vrcp.pop %v514
  %v585 = vrcp.pop %v521
  %v586 = vrcp.pop %v528
  %v587 = vrcp.pop %v535
  %v588 = vrcp.pop %v542
  %v589 = vrcp.pop %v549
  %v590 = vrcp.pop %v556
  %v591 = vrcp.pop %v563
  %v592 = vrcp.pop %v570
  %v593 = vrcp.pop %v577
  %v594 = vmul.f32 %v435, %v578
  %v595 = vmul.f32 %v437, %v579
  %v596 = vmul.f32 %v439, %v580
  %v597 = vmul.f32 %v441, %v581
  %v598 = vmul.f32 %v443, %v582
  %v599 = vmul.f32 %v445, %v583
  %v600 = vmul.f32 %v447, %v584
  %v601 = vmul.f32 %v449, %v585
  %v602 = vmul.f32 %v451, %v586
  %v603 = vmul.f32 %v453, %v587
  %v604 = vmul.f32 %v455, %v588
  %v605 = vmul.f32 %v457, %v589
  %v606 = vmul.f32 %v459, %v590
  %v607 = vmul.f32 %v461, %v591
  %v608 = vmul.f32 %v463, %v592
  %v609 = vmul.f32 %v465, %v593
  %610 = vst.msk [vmem:[%s3] sm:$0xff] %vm305, %v594
  %611 = vst.msk [vmem:[%s3 + $0x8] sm:$0xff] %vm305, %v595
  %612 = vst.msk [vmem:[%s3 + $0x10] sm:$0xff] %vm305, %v596
  %613 = vst.msk [vmem:[%s3 + $0x18] sm:$0xff] %vm305, %v597
  %614 = vst.msk [vmem:[%s3 + $0x20] sm:$0xff] %vm305, %v598
  %615 = vst.msk [vmem:[%s3 + $0x28] sm:$0xff] %vm305, %v599
  %616 = vst.msk [vmem:[%s3 + $0x30] sm:$0xff] %vm305, %v600
  %617 = vst.msk [vmem:[%s3 + $0x38] sm:$0xff] %vm305, %v601
  %618 = vst.msk [vmem:[%s3 + $0x40] sm:$0xff] %vm305, %v602
  %619 = vst.msk [vmem:[%s3 + $0x48] sm:$0xff] %vm305, %v603
  %620 = vst.msk [vmem:[%s3 + $0x50] sm:$0xff] %vm305, %v604
  %621 = vst.msk [vmem:[%s3 + $0x58] sm:$0xff] %vm305, %v605
  %622 = vst.msk [vmem:[%s3 + $0x60] sm:$0xff] %vm305, %v606
  %623 = vst.msk [vmem:[%s3 + $0x68] sm:$0xff] %vm305, %v607
  %624 = vst.msk [vmem:[%s3 + $0x70] sm:$0xff] %vm305, %v608
  %625 = vst.msk [vmem:[%s3 + $0x78] sm:$0xff] %vm305, %v609
  // Predicated region
  $region14: #{tpu_custom_call.1} parent=0 // pred_check
    _
  $region15: #{tpu_custom_call.1} parent=0 // pred_check_branch
    %627 = sbr.rel (0) target = $region17
  $region16: #{tpu_custom_call.1} parent=0 // pred_region
    _
  $region17: #{tpu_custom_call.1} parent=0 // pred_fallthru
    _
  // Predicated region
  $region18: #{tpu_custom_call.1} parent=0 // pred_check
    _
  $region19: #{tpu_custom_call.1} parent=0 // pred_check_branch
    %629 = sbr.rel (0) target = $region21
  $region20: #{tpu_custom_call.1} parent=0 // pred_region
    _
  $region21: #{tpu_custom_call.1} parent=0 // pred_fallthru
    _

</llo_original>
